<compile_context>
chip_gen: v5e
topology: v5e:2x2
jax: 0.10.0
libtpu: 0.0.40
codegen_flags: <defaults>
</compile_context>

<pallas_src>
import math

import jax
import jax.numpy as jnp
from jax.experimental import pallas as pl
from jax.experimental.pallas import tpu as pltpu


def _make_nst_block_kernel(d, c, seq_len, dim, matmul_dtype=None):
    d = int(d)
    c = float(c)
    L = float(seq_len)
    inv_dim2 = 1.0 / float(dim * dim)
    use_ss_gram = (d == 2) and (seq_len <= dim)

    # Binomial coefficients for the separable yy / zz terms.
    coefs = [math.comb(d, k) * (c ** (d - k)) for k in range(d + 1)]

    def _sum_last2(x):  # (bB, M, N) -> (bB, 1, 1)
        return jnp.sum(jnp.sum(x, axis=2, keepdims=True), axis=1, keepdims=True)

    def _moments(x):  # x: (bB, 1, D) -> [m_0..m_d], m_k = sum_j x_j^k  (bB,1,1)
        ms = [float(dim)]                                   # sum_j x_j^0 = D
        p = x
        ms.append(jnp.sum(p, axis=2, keepdims=True))
        for _ in range(2, d + 1):
            p = p * x
            ms.append(jnp.sum(p, axis=2, keepdims=True))
        return ms

    def kernel(s_ref, t_ref, o_ref):
        s = s_ref[...]                                       # (bB, S, D) f32
        t = t_ref[...]                                       # (bB, 1, D) f32
        sm = s if matmul_dtype is None else s.astype(matmul_dtype)

        # column sums over the seq axis: u[b, 0, i] = sum_s s[b, s, i]
        u = jnp.sum(s, axis=1, keepdims=True)                # (bB, 1, D)

        # ---- xx: student/student term ---------------------------------------
        if use_ss_gram:
            # d == 2, S <= D: SxS Gram, contraction over D (good MXU fill).
            g = jnp.einsum('bpd,bqd->bpq', sm, sm,
                           preferred_element_type=jnp.float32)   # (bB, S, S)
            xx = _sum_last2(g * g)
            if c != 0.0:
                rs = jnp.sum(s, axis=2, keepdims=True)           # (bB, S, 1)
                xx = (xx + (2.0 * c) * jnp.sum(rs * rs, axis=1, keepdims=True)
                      + (c * c) * float(dim * dim))
        else:
            # generic d: DxD Gram (contraction over S), direct power sum.
            g = jnp.einsum('bsi,bsj->bij', sm, sm,
                           preferred_element_type=jnp.float32)   # (bB, D, D)
            gc = g + c if c != 0.0 else g
            xx = _sum_last2(gc ** d)

        # ---- yy / zz: separable terms via D-length moments (any c, d) -------
        m_t = _moments(t)
        m_u = _moments(u)
        yy = 0.0
        zz = 0.0
        for k in range(d + 1):
            ck = coefs[k]
            if ck == 0.0:          # drops all but k == d when c == 0
                continue
            yy = yy + (ck * (L ** k)) * (m_t[k] * m_t[k])
            zz = zz + ck * (m_u[k] * m_t[k])

        o_ref[...] = ((xx + yy - 2.0 * zz) * inv_dim2).astype(o_ref.dtype)

    return kernel


def _padded_f32_bytes(rows, cols):
    # f32 bytes of a (rows, cols) tile after (8, 128) layout padding.
    return 4 * (-(-rows // 8) * 8) * (-(-cols // 128) * 128)


def _choose_block_b(B, S, D, d):
    """Pick how many batch elements to process per grid step."""
    per = 2 * (_padded_f32_bytes(S, D) + _padded_f32_bytes(1, D))  # dbl-buffered inputs
    per += _padded_f32_bytes(1, D)                                 # colsum u
    if d == 2 and S <= D:
        per += 2 * _padded_f32_bytes(S, S) + _padded_f32_bytes(S, 1)
    else:
        per += 3 * _padded_f32_bytes(D, D)
    per += 16 * _padded_f32_bytes(1, 1)                            # small scalars
    budget = 24 * 1024 * 1024      # headroom under the 32 MiB scoped VMEM limit
    bb = max(1, min(B, budget // max(per, 1)))
    if B >= 2:
        bb = min(bb, max(1, B // 2))   # keep >= 2 grid steps (v7x has 2 TensorCores)
    while B % bb:                      # use a divisor of B -> no padded batch blocks
        bb -= 1
    return bb


def nst_kd_loss(student_features, teacher_features, d=2, c=0.0, matmul_dtype=None):
    """Pallas implementation of NST_KDLoss.forward.

    student_features: (B, S, D); teacher_features: (B, D). Returns scalar f32.
    `matmul_dtype=jnp.bfloat16` optionally runs the Gram matmul in bf16 (f32 acc).
    """
    d = int(d)
    assert d >= 1, "polynomial degree d must be a positive integer"
    student = student_features.astype(jnp.float32)
    teacher = teacher_features.astype(jnp.float32)
    B, S, D = student.shape
    assert teacher.shape == (B, D)
    teacher3 = teacher.reshape(B, 1, D)

    bb = _choose_block_b(B, S, D, d)
    # TODO(synk): if a single (1, S, D) example block approaches the VMEM budget
    # (S*D in the multi-million range), an inner seq-axis pipeline over partial
    # Grams (pltpu.emit_pipeline) would be needed; not required at these sizes.

    kernel = _make_nst_block_kernel(d, c, S, D, matmul_dtype)

    per_batch = pl.pallas_call(
        kernel,
        out_shape=jax.ShapeDtypeStruct((B, 1, 1), jnp.float32),
        grid_spec=pltpu.PrefetchScalarGridSpec(
            num_scalar_prefetch=0,
            grid=(B // bb,),
            in_specs=[
                pl.BlockSpec((bb, S, D), lambda n: (n, 0, 0)),
                pl.BlockSpec((bb, 1, D), lambda n: (n, 0, 0)),
            ],
            out_specs=pl.BlockSpec((bb, 1, 1), lambda n: (n, 0, 0)),
        ),
        compiler_params=pltpu.CompilerParams(
            dimension_semantics=("parallel",),
            vmem_limit_bytes=32 * 1024 * 1024),
    )(student, teacher3)

    return jnp.mean(per_batch)


def nst_kd_loss_ref(student, teacher, d=2, c=0.0):
    """Pure-JAX reference mirroring the PyTorch double loop."""
    B, S, D = student.shape
    tb = jnp.broadcast_to(teacher[:, None, :], (B, S, D))
    g_ss = jnp.einsum('nsi,nsj->nij', student, student)
    g_tt = jnp.einsum('nsi,nsj->nij', tb, tb)
    g_st = jnp.einsum('nsi,nsj->nij', student, tb)
    per_n = ((g_ss + c) ** d + (g_tt + c) ** d
             - 2.0 * (g_st + c) ** d).sum(axis=(1, 2)) / float(D * D)
    return per_n.mean()


if __name__ == "__main__":
    key = jax.random.PRNGKey(0)
    k1, k2 = jax.random.split(key)

    B, S, D = 4, 8, 32
    student = jax.random.normal(k1, (B, S, D), dtype=jnp.float32)
    teacher = jax.random.normal(k2, (B, D), dtype=jnp.float32)

    # default config (d=2, c=0) plus the other code paths (c != 0, d != 2)
    for d, c in [(2, 0.0), (2, 1.5), (3, 0.7)]:
        loss = jax.block_until_ready(nst_kd_loss(student, teacher, d=d, c=c))
        ref = nst_kd_loss_ref(student, teacher, d=d, c=c)
        assert jnp.allclose(loss, ref, rtol=1e-3, atol=1e-3), (d, c, loss, ref)

    print("KERNEL_OK")
</pallas_src>

<mosaic_0001>
module attributes {stable_mosaic.version = 11 : i64} {
  func.func @kernel(%arg0: i32, %arg1: memref<2x8x32xf32, #tpu.memory_space<vmem>>, %arg2: memref<2x1x32xf32, #tpu.memory_space<vmem>>, %arg3: memref<2x1x1xf32, #tpu.memory_space<vmem>>) attributes {dimension_semantics = [#tpu.dimension_semantics<parallel>], iteration_bounds = array<i64: 2>, scalar_prefetch = 0 : i64, scratch_operands = 0 : i64, tpu.core_type = #tpu.core_type<tc>, window_params = [{transform_indices = @transform_0, window_bounds = array<i64: 2, 8, 32>}, {transform_indices = @transform_1, window_bounds = array<i64: 2, 1, 32>}, {transform_indices = @transform_2, window_bounds = array<i64: 2, 1, 1>}]} {
    %c0 = arith.constant 0 : index
    %c0_0 = arith.constant 0 : index
    %c0_1 = arith.constant 0 : index
    %0 = vector.load %arg1[%c0, %c0_0, %c0_1] : memref<2x8x32xf32, #tpu.memory_space<vmem>>, vector<2x8x32xf32>
    %c0_2 = arith.constant 0 : index
    %c0_3 = arith.constant 0 : index
    %c0_4 = arith.constant 0 : index
    %1 = vector.load %arg2[%c0_2, %c0_3, %c0_4] : memref<2x1x32xf32, #tpu.memory_space<vmem>>, vector<2x1x32xf32>
    %cst = arith.constant dense<0.000000e+00> : vector<2x32xf32>
    %2 = vector.multi_reduction <add>, %0, %cst [1] : vector<2x8x32xf32> to vector<2x32xf32>
    %3 = vector.shape_cast %2 : vector<2x32xf32> to vector<2x1x32xf32>
    "tpu.trace_start"() <{level = 10 : i32, message = "bpd,bqd->bpq"}> : () -> ()
    %cst_5 = arith.constant dense<0.000000e+00> : vector<2x8x8xf32>
    %4 = tpu.matmul %0, %0, %cst_5 {dimension_numbers = #tpu.dot_dimension_numbers<[2], [2], [1], [1], [0, 0, 0, 1, 1, 1], [0], [0]>} : vector<2x8x32xf32>, vector<2x8x32xf32>, vector<2x8x8xf32> -> vector<2x8x8xf32>
    "tpu.trace_stop"() : () -> ()
    %5 = arith.mulf %4, %4 : vector<2x8x8xf32>
    %cst_6 = arith.constant dense<0.000000e+00> : vector<2x8xf32>
    %6 = vector.multi_reduction <add>, %5, %cst_6 [2] : vector<2x8x8xf32> to vector<2x8xf32>
    %7 = vector.shape_cast %6 : vector<2x8xf32> to vector<2x8x1xf32>
    %cst_7 = arith.constant dense<0.000000e+00> : vector<2x1xf32>
    %8 = vector.multi_reduction <add>, %7, %cst_7 [1] : vector<2x8x1xf32> to vector<2x1xf32>
    %9 = vector.shape_cast %8 : vector<2x1xf32> to vector<2x1x1xf32>
    %10 = arith.mulf %1, %1 : vector<2x1x32xf32>
    %cst_8 = arith.constant dense<0.000000e+00> : vector<2x1xf32>
    %11 = vector.multi_reduction <add>, %10, %cst_8 [2] : vector<2x1x32xf32> to vector<2x1xf32>
    %12 = vector.shape_cast %11 : vector<2x1xf32> to vector<2x1x1xf32>
    %13 = arith.mulf %3, %3 : vector<2x1x32xf32>
    %cst_9 = arith.constant dense<0.000000e+00> : vector<2x1xf32>
    %14 = vector.multi_reduction <add>, %13, %cst_9 [2] : vector<2x1x32xf32> to vector<2x1xf32>
    %15 = vector.shape_cast %14 : vector<2x1xf32> to vector<2x1x1xf32>
    %16 = arith.mulf %12, %12 : vector<2x1x1xf32>
    %cst_10 = arith.constant 6.400000e+01 : f32
    %17 = vector.broadcast %cst_10 : f32 to vector<2x1x1xf32>
    %18 = arith.mulf %17, %16 : vector<2x1x1xf32>
    %cst_11 = arith.constant 0.000000e+00 : f32
    %19 = vector.broadcast %cst_11 : f32 to vector<2x1x1xf32>
    %20 = arith.addf %19, %18 : vector<2x1x1xf32>
    %21 = arith.mulf %15, %12 : vector<2x1x1xf32>
    %cst_12 = arith.constant 1.000000e+00 : f32
    %22 = vector.broadcast %cst_12 : f32 to vector<2x1x1xf32>
    %23 = arith.mulf %22, %21 : vector<2x1x1xf32>
    %cst_13 = arith.constant 0.000000e+00 : f32
    %24 = vector.broadcast %cst_13 : f32 to vector<2x1x1xf32>
    %25 = arith.addf %24, %23 : vector<2x1x1xf32>
    %26 = arith.addf %9, %20 : vector<2x1x1xf32>
    %cst_14 = arith.constant 2.000000e+00 : f32
    %27 = vector.broadcast %cst_14 : f32 to vector<2x1x1xf32>
    %28 = arith.mulf %27, %25 : vector<2x1x1xf32>
    %29 = arith.subf %26, %28 : vector<2x1x1xf32>
    %cst_15 = arith.constant 9.765625E-4 : f32
    %30 = vector.broadcast %cst_15 : f32 to vector<2x1x1xf32>
    %31 = arith.mulf %29, %30 : vector<2x1x1xf32>
    %c0_16 = arith.constant 0 : index
    %c0_17 = arith.constant 0 : index
    %c0_18 = arith.constant 0 : index
    %32 = vector.load %arg3[%c0_16, %c0_17, %c0_18] : memref<2x1x1xf32, #tpu.memory_space<vmem>>, vector<2x1x1xf32>
    tpu.vector_store %arg3[%c0_16, %c0_17, %c0_18], %31 {strides = array<i32>} : memref<2x1x1xf32, #tpu.memory_space<vmem>>, vector<2x1x1xf32>,
    return
  }
  func.func @transform_0(%arg0: i32) -> (i32, i32, i32) {
    %c0_i32 = arith.constant 0 : i32
    %c0_i32_0 = arith.constant 0 : i32
    %c0_i32_1 = arith.constant 0 : i32
    return %arg0, %c0_i32, %c0_i32_0 : i32, i32, i32
  }
  func.func @transform_1(%arg0: i32) -> (i32, i32, i32) {
    %c0_i32 = arith.constant 0 : i32
    %c0_i32_0 = arith.constant 0 : i32
    %c0_i32_1 = arith.constant 0 : i32
    return %arg0, %c0_i32, %c0_i32_0 : i32, i32, i32
  }
  func.func @transform_2(%arg0: i32) -> (i32, i32, i32) {
    %c0_i32 = arith.constant 0 : i32
    %c0_i32_0 = arith.constant 0 : i32
    %c0_i32_1 = arith.constant 0 : i32
    return %arg0, %c0_i32, %c0_i32_0 : i32, i32, i32
  }
}

</mosaic_0001>

<llo_original>
// kernel: tpu_custom_call.1
$region0: #{tpu_custom_call.1}
  #allocation0 [shape = 'u32[]', space=smem, size = 0x4, offset = 0x4, fixed_abs, tag = 'smem constant byte address 0x4 - core index']
  #allocation1 [shape = 'u32[72,128]{1,0:T(1,128)}', space=vmem, size = 0x9000, scoped, tag = 'internal scratch']
  %s0 = inlined_call_operand.hbm [shape: f32[4,8,32], index: 0, kind: input, shape index: {}]
  %s1 = inlined_call_operand.hbm [shape: f32[4,1,32], index: 1, kind: input, shape index: {}]
  %s2 = inlined_call_operand.vmem [shape: f32[4,1,1], index: 2, kind: output, shape index: {}]
  %s3 = sld [smem:[#allocation0]]
  $region49: #{tpu_custom_call.1} parent=0
    _
  %s5 = ssub.s32 1, %s3
  %s6 = scalar_select 0, %s5, %s3
  $region1: #{tpu_custom_call.1} parent=0
    #allocation2 [shape = 'u8[16384]{0}', space=vmem, size = 0x4000, scoped, tag = 'input window, operand 0']
    #allocation3 [shape = 's32[2]{0}', space=sflag, size = 0x8, scoped, tag = 'scoped memory for tpu_custom_call.1']
    #allocation4 [shape = 'u8[2048]{0}', space=vmem, size = 0x800, scoped, tag = 'input window, operand 1']
    #allocation5 [shape = 's32[2]{0}', space=sflag, size = 0x8, scoped, tag = 'scoped memory for tpu_custom_call.1']
    %7 = vsyncpa [#allocation3], 0
    %s8 = scalar_lea.sflag [#allocation3], 1
    %9 = vsyncpa %s8, 0
    %10 = vsyncpa [#allocation5], 0
    %s11 = scalar_lea.sflag [#allocation5], 1
    %12 = vsyncpa %s11, 0
    loop: start=0, step=1, limit=4
    $region2: #{tpu_custom_call.1} parent=1 // loop_pre_header
      _
    $region3: #{tpu_custom_call.1} parent=1 // loop_header
      %s14 = sphi 0, %s18
      %p15 = scmp.ge.s32.totalorder %s14, 4
      %s24 = sphi 0, %s26
      %s27 = sphi 0, %s24
      %s28 = sphi 0, %s27
      %s44 = sphi 0, %s28
      %s50 = sphi 0, %s52
      %s53 = sphi 0, %s50
      %s54 = sphi 0, %s53
      %s70 = sphi 0, %s54
      %s76 = sphi 0, %s78
      %s79 = sphi 0, %s76
      %s80 = sphi 0, %s79
      %s96 = sphi 0, %s80
    $region4: #{tpu_custom_call.1} parent=1 // loop_header_branch
      %17 = sbr.rel (%p15) target = $region8
    $region5: #{tpu_custom_call.1} parent=1 // loop_body
      %s19 = ssub.s32 %s14, 1
      %s20 = ssub.s32 %s14, 2
      %s21 = sadd.s32 %s14, 1
      %s22 = ssub.s32 %s14, %s21
      %p23 = scmp.eq.s32.totalorder %s22, 0
      %s25 = sadd.s32 %s24, 1
      %s26 = scalar_select %p23, %s24, %s25
      %p29 = pneg %p23
      %p30 = scmp.eq.s32.totalorder %s14, 1
      %p31 = por %p29, %p30
      %p32 = scmp.ne.s32.totalorder %s24, %s27
      %p33 = scmp.eq.s32.totalorder %s14, 0
      %p34 = por %p32, %p33
      %p35 = scmp.ne.s32.totalorder %s24, %s27
      %p36 = scmp.eq.s32.totalorder %s19, 1
      %p37 = por %p35, %p36
      %p38 = scmp.ne.s32.totalorder %s27, %s28
      %p39 = scmp.eq.s32.totalorder %s19, 0
      %p40 = por %p38, %p39
      %p41 = scmp.ne.s32.totalorder %s27, %s28
      %p42 = scmp.eq.s32.totalorder %s20, 1
      %p43 = por %p41, %p42
      %p45 = scmp.ne.s32.totalorder %s28, %s44
      %p46 = scmp.eq.s32.totalorder %s20, 0
      %p47 = por %p45, %p46
      %s48 = ssub.s32 %s14, %s21
      %p49 = scmp.eq.s32.totalorder %s48, 0
      %s51 = sadd.s32 %s50, 1
      %s52 = scalar_select %p49, %s50, %s51
      %p55 = pneg %p49
      %p56 = scmp.eq.s32.totalorder %s14, 1
      %p57 = por %p55, %p56
      %p58 = scmp.ne.s32.totalorder %s50, %s53
      %p59 = scmp.eq.s32.totalorder %s14, 0
      %p60 = por %p58, %p59
      %p61 = scmp.ne.s32.totalorder %s50, %s53
      %p62 = scmp.eq.s32.totalorder %s19, 1
      %p63 = por %p61, %p62
      %p64 = scmp.ne.s32.totalorder %s53, %s54
      %p65 = scmp.eq.s32.totalorder %s19, 0
      %p66 = por %p64, %p65
      %p67 = scmp.ne.s32.totalorder %s53, %s54
      %p68 = scmp.eq.s32.totalorder %s20, 1
      %p69 = por %p67, %p68
      %p71 = scmp.ne.s32.totalorder %s54, %s70
      %p72 = scmp.eq.s32.totalorder %s20, 0
      %p73 = por %p71, %p72
      %s74 = ssub.s32 %s14, %s21
      %p75 = scmp.eq.s32.totalorder %s74, 0
      %s77 = sadd.s32 %s76, 1
      %s78 = scalar_select %p75, %s76, %s77
      %p81 = pneg %p75
      %p82 = scmp.eq.s32.totalorder %s14, 1
      %p83 = por %p81, %p82
      %p84 = scmp.ne.s32.totalorder %s76, %s79
      %p85 = scmp.eq.s32.totalorder %s14, 0
      %p86 = por %p84, %p85
      %p87 = scmp.ne.s32.totalorder %s76, %s79
      %p88 = scmp.eq.s32.totalorder %s19, 1
      %p89 = por %p87, %p88
      %p90 = scmp.ne.s32.totalorder %s79, %s80
      %p91 = scmp.eq.s32.totalorder %s19, 0
      %p92 = por %p90, %p91
      %p93 = scmp.ne.s32.totalorder %s79, %s80
      %p94 = scmp.eq.s32.totalorder %s20, 1
      %p95 = por %p93, %p94
      %p97 = scmp.ne.s32.totalorder %s80, %s96
      %p98 = scmp.eq.s32.totalorder %s20, 0
      %p99 = por %p97, %p98
      %p100 = scmp.le.s32.totalorder 1, %s14
      %p101 = scmp.lt.s32.totalorder %s14, 3
      %p102 = pnand %p100, %p101
      %p103 = pneg %p102
      // Predicated region
      $region9: #{tpu_custom_call.1} parent=5 // pred_check
        _
      $region10: #{tpu_custom_call.1} parent=5 // pred_check_branch
        %105 = sbr.rel (%p102) target = $region12
      $region11: #{tpu_custom_call.1} parent=5 // pred_region
        %s106 = ssub.s32 %s14, 1
      $region12: #{tpu_custom_call.1} parent=5 // pred_fallthru
        _
      %p107 = scmp.lt.s32.totalorder %s14, 2
      // Predicated region
      $region13: #{tpu_custom_call.1} parent=5 // pred_check
        %p108 = pneg %p107
      $region14: #{tpu_custom_call.1} parent=5 // pred_check_branch
        %110 = sbr.rel (%p108) target = $region16
      $region15: #{tpu_custom_call.1} parent=5 // pred_region
        // Predicated region
        $region17: #{tpu_custom_call.1} parent=15 // pred_check
          %p111 = pneg %p34
        $region18: #{tpu_custom_call.1} parent=15 // pred_check_branch
          %113 = sbr.rel (%p111) target = $region20
        $region19: #{tpu_custom_call.1} parent=15 // pred_region
          %s114 = sand.u32 %s24, 1
          %s115 = scalar_lea.sflag [#allocation3], %s114
          %s116 = sand.u32 %s24, 1
          %s117 = smul.addr %s116, 16
          %s118 = scalar_lea.vmem [#allocation2], %s117
          %s119 = smul.u32 2, %s14
          %121 = vsyncadd %s115, 0
          %s122 = smul.addr %s119, 8
          %s123 = scalar_lea.hbm %s0, %s122
          %s124 = sshll.u32 %s123, 4
          %s125 = int_to_ptr.hbm [resolvable:$true] %s124
          %s126 = sshll.u32 %s118, 4
          %s127 = int_to_ptr.vmem [resolvable:$true] %s126
          %132 = dma.hbm_to_vmem [thread:$0]  %s125, 256, %s127, %s115, 128, 128, 8
        $region20: #{tpu_custom_call.1} parent=15 // pred_fallthru
          _
        // Predicated region
        $region21: #{tpu_custom_call.1} parent=15 // pred_check
          %p133 = pneg %p60
        $region22: #{tpu_custom_call.1} parent=15 // pred_check_branch
          %135 = sbr.rel (%p133) target = $region24
        $region23: #{tpu_custom_call.1} parent=15 // pred_region
          %s136 = sand.u32 %s50, 1
          %s137 = scalar_lea.sflag [#allocation5], %s136
          %s138 = sand.u32 %s50, 1
          %s139 = smul.addr %s138, 2
          %s140 = scalar_lea.vmem [#allocation4], %s139
          %s141 = smul.u32 2, %s14
          %143 = vsyncadd %s137, 0
          %s144 = scalar_lea.hbm %s1, %s141
          %s145 = sshll.u32 %s144, 4
          %s146 = int_to_ptr.hbm [resolvable:$true] %s145
          %s147 = sshll.u32 %s140, 4
          %s148 = int_to_ptr.vmem [resolvable:$true] %s147
          %153 = dma.hbm_to_vmem [thread:$0]  %s146, 32, %s148, %s137, 16, 16, 1
        $region24: #{tpu_custom_call.1} parent=15 // pred_fallthru
          _
      $region16: #{tpu_custom_call.1} parent=5 // pred_fallthru
        _
      %p154 = scmp.le.s32.totalorder 1, %s14
      %p155 = scmp.lt.s32.totalorder %s14, 3
      %p156 = pnand %p154, %p155
      %p157 = pneg %p156
      // Predicated region
      $region25: #{tpu_custom_call.1} parent=5 // pred_check
        _
      $region26: #{tpu_custom_call.1} parent=5 // pred_check_branch
        %159 = sbr.rel (%p156) target = $region28
      $region27: #{tpu_custom_call.1} parent=5 // pred_region
        %s160 = ssub.s32 %s14, 1
        %s161 = sand.u32 %s27, 1
        %s162 = scalar_lea.sflag [#allocation3], %s161
        %s163 = sand.u32 %s27, 1
        %s164 = smul.addr %s163, 16
        %s165 = scalar_lea.vmem [#allocation2], %s164
        // Predicated region
        $region29: #{tpu_custom_call.1} parent=27 // pred_check
          %p166 = pneg %p40
        $region30: #{tpu_custom_call.1} parent=27 // pred_check_branch
          %168 = sbr.rel (%p166) target = $region32
        $region31: #{tpu_custom_call.1} parent=27 // pred_region
          %170 = dma.done %s162, 256
        $region32: #{tpu_custom_call.1} parent=27 // pred_fallthru
          _
        %s171 = sand.u32 %s53, 1
        %s172 = scalar_lea.sflag [#allocation5], %s171
        %s173 = sand.u32 %s53, 1
        %s174 = smul.addr %s173, 2
        %s175 = scalar_lea.vmem [#allocation4], %s174
        // Predicated region
        $region33: #{tpu_custom_call.1} parent=27 // pred_check
          %p176 = pneg %p66
        $region34: #{tpu_custom_call.1} parent=27 // pred_check_branch
          %178 = sbr.rel (%p176) target = $region36
        $region35: #{tpu_custom_call.1} parent=27 // pred_region
          %180 = dma.done %s172, 32
        $region36: #{tpu_custom_call.1} parent=27 // pred_fallthru
          _
        %s181 = sand.u32 %s27, 1
        %s182 = scalar_lea.sflag [#allocation3], %s181
        %s183 = sand.u32 %s27, 1
        %s184 = smul.addr %s183, 16
        %s185 = scalar_lea.vmem [#allocation2], %s184
        %p186 = pneg %p40
        %p187 = pneg %p37
        %s188 = sand.u32 %s53, 1
        %s189 = scalar_lea.sflag [#allocation5], %s188
        %s190 = sand.u32 %s53, 1
        %s191 = smul.addr %s190, 2
        %s192 = scalar_lea.vmem [#allocation4], %s191
        %p193 = pneg %p66
        %p194 = pneg %p63
        %p195 = pneg %p92
        %p196 = pneg %p89
        %s197 = smul.u32 2, %s19
        %p198 = scmp.lt.s32.totalorder %s197, 3
        %s199 = scalar_select %p198, %s197, 3
        %s200 = scalar_lea.vmem %s2, %s199
        %s201 = smul.u32 2, %s19
        %s202 = smul.u32 2, %s19
        %s203 = smul.u32 2, %s19
        %p204 = scmp.lt.s32.totalorder %s203, 3
        %s205 = scalar_select %p204, %s203, 3
        %s206 = scalar_lea.vmem %s2, %s205
        %s207 = smul.u32 2, %s19
        %v208 = vld [vmem:[%s165] sm:$0xff]
        %v209 = vld [vmem:[%s165 + $0x8] sm:$0xff]
        %v210 = vld [vmem:[%s175] sm:$0x1]
        %v211 = vld [vmem:[%s175 + $0x1] sm:$0x1]
        %vm212 = vcmask 261120
        %v213 = vsel %vm212, %v208, 0.0
        %v214 = vrot.slane %v213, 4
        %v215 = vadd.f32 %v213, %v214
        %v216 = vrot.slane %v215, 2
        %v217 = vadd.f32 %v215, %v216
        %v218 = vrot.slane %v217, 1
        %v219 = vadd.f32 %v217, %v218
        %v220 = vsel %vm212, %v209, 0.0
        %v221 = vrot.slane %v220, 4
        %v222 = vadd.f32 %v220, %v221
        %v223 = vrot.slane %v222, 2
        %v224 = vadd.f32 %v222, %v223
        %v225 = vrot.slane %v224, 1
        %v226 = vadd.f32 %v224, %v225
        %v228 = vsel %vm212, %v208, 0
        %230 = vmatpush.xpose.msra.mxu0 0.0
        %231 = vmatpush.xpose.msra.mxu0 0.0
        %232 = vmatpush.xpose.msra.mxu0 0.0
        %233 = vmatpush.xpose.msra.mxu0 0.0
        %234 = vmatpush.xpose.msra.mxu0 0.0
        %235 = vmatpush.xpose.msra.mxu0 0.0
        %236 = vmatpush.xpose.msra.mxu0 0.0
        %237 = vmatpush.xpose.msra.mxu0 0.0
        %238 = vmatpush.xpose.msra.mxu0 0.0
        %239 = vmatpush.xpose.msra.mxu0 0.0
        %240 = vmatpush.xpose.msra.mxu0 0.0
        %241 = vmatpush.xpose.msra.mxu0 0.0
        %242 = vmatpush.xpose.msra.mxu0 0.0
        %243 = vmatpush.xpose.msra.mxu0 0.0
        %244 = vmatpush.xpose.msra.mxu0 0.0
        %245 = vmatpush.xpose.msra.mxu0 %v228
        %246 = vmatmul.f32.gmra.mxu0 %v228
        %v247 = vpop.f32.mrf.mxu0
        %v248 = vadd.f32 0.0, %v247
        %249 = vdwg.mxu0
        %v251 = vsel %vm212, %v209, 0
        %253 = vmatpush.xpose.msra.mxu0 0.0
        %254 = vmatpush.xpose.msra.mxu0 0.0
        %255 = vmatpush.xpose.msra.mxu0 0.0
        %256 = vmatpush.xpose.msra.mxu0 0.0
        %257 = vmatpush.xpose.msra.mxu0 0.0
        %258 = vmatpush.xpose.msra.mxu0 0.0
        %259 = vmatpush.xpose.msra.mxu0 0.0
        %260 = vmatpush.xpose.msra.mxu0 0.0
        %261 = vmatpush.xpose.msra.mxu0 0.0
        %262 = vmatpush.xpose.msra.mxu0 0.0
        %263 = vmatpush.xpose.msra.mxu0 0.0
        %264 = vmatpush.xpose.msra.mxu0 0.0
        %265 = vmatpush.xpose.msra.mxu0 0.0
        %266 = vmatpush.xpose.msra.mxu0 0.0
        %267 = vmatpush.xpose.msra.mxu0 0.0
        %268 = vmatpush.xpose.msra.mxu0 %v251
        %269 = vmatmul.f32.gmra.mxu0 %v251
        %v270 = vpop.f32.mrf.mxu0
        %v271 = vadd.f32 0.0, %v270
        %272 = vdwg.mxu0
        %v273 = vmul.f32 %v248, %v248
        %v274 = vmul.f32 %v271, %v271
        %vm275 = vcmask 64512
        %v276 = vsel %vm275, %v273, 0.0
        %277 = vadd.xlane.f32.xlu0 %v276
        %v278 = vpop.xlane.xlu0 %277
        %v279 = vsel %vm275, %v274, 0.0
        %280 = vadd.xlane.f32.xlu0 %v279
        %v281 = vpop.xlane.xlu0 %280
        %v282 = vrot.slane %v278, 4
        %v283 = vadd.f32 %v278, %v282
        %v284 = vrot.slane %v283, 2
        %v285 = vadd.f32 %v283, %v284
        %v286 = vrot.slane %v285, 1
        %v287 = vadd.f32 %v285, %v286
        %v288 = vrot.slane %v281, 4
        %v289 = vadd.f32 %v281, %v288
        %v290 = vrot.slane %v289, 2
        %v291 = vadd.f32 %v289, %v290
        %v292 = vrot.slane %v291, 1
        %v293 = vadd.f32 %v291, %v292
        %v294 = vmul.f32 %v210, %v210
        %v295 = vmul.f32 %v211, %v211
        %vm296 = vcmask 253952
        %v297 = vsel %vm296, %v294, 0.0
        %298 = vadd.xlane.f32.xlu0 %v297
        %v299 = vpop.xlane.xlu0 %298
        %v300 = vsel %vm296, %v295, 0.0
        %301 = vadd.xlane.f32.xlu0 %v300
        %v302 = vpop.xlane.xlu0 %301
        %v303 = vmul.f32 %v219, %v219
        %v304 = vmul.f32 %v226, %v226
        %v305 = vsel %vm212, %v303, 0.0
        %306 = vadd.xlane.f32.xlu0 %v305
        %v307 = vpop.xlane.xlu0 %306
        %v308 = vsel %vm212, %v304, 0.0
        %309 = vadd.xlane.f32.xlu0 %v308
        %v310 = vpop.xlane.xlu0 %309
        %v311 = vmul.f32 %v299, %v299
        %v312 = vmul.f32 %v302, %v302
        %v313 = vmul.f32 %v311, 64.0
        %v314 = vmul.f32 %v312, 64.0
        %v315 = vadd.f32 %v313, 0.0
        %v316 = vadd.f32 %v314, 0.0
        %v317 = vmul.f32 %v307, %v299
        %v318 = vmul.f32 %v310, %v302
        %v319 = vadd.f32 %v317, 0.0
        %v320 = vadd.f32 %v318, 0.0
        %v321 = vadd.f32 %v287, %v315
        %v322 = vadd.f32 %v293, %v316
        %v323 = vmul.f32 %v319, 2.0
        %v324 = vmul.f32 %v320, 2.0
        %v325 = vsub.f32 %v321, %v323
        %v326 = vsub.f32 %v322, %v324
        %v327 = vmul.f32 %v325, 0.0009765625
        %v328 = vmul.f32 %v326, 0.0009765625
        %vm329 = vcmask 0
        %330 = vst.msk [vmem:[%s206] sm:$0x1] %vm329, %v327
        %331 = vst.msk [vmem:[%s206 + $0x1] sm:$0x1] %vm329, %v328
        %s332 = smul.u32 2, %s19
        %p333 = scmp.lt.s32.totalorder %s332, 3
        %s334 = scalar_select %p333, %s332, 3
        %s335 = scalar_lea.vmem %s2, %s334
        // Predicated region
        $region37: #{tpu_custom_call.1} parent=27 // pred_check
          %p336 = pneg %p89
        $region38: #{tpu_custom_call.1} parent=27 // pred_check_branch
          %338 = sbr.rel (%p336) target = $region40
        $region39: #{tpu_custom_call.1} parent=27 // pred_region
          %s339 = smul.u32 2, %s19
        $region40: #{tpu_custom_call.1} parent=27 // pred_fallthru
          _
      $region28: #{tpu_custom_call.1} parent=5 // pred_fallthru
        _
      %p340 = scmp.le.s32.totalorder 2, %s14
      // Predicated region
      $region41: #{tpu_custom_call.1} parent=5 // pred_check
        %p341 = pneg %p340
      $region42: #{tpu_custom_call.1} parent=5 // pred_check_branch
        %343 = sbr.rel (%p341) target = $region44
      $region43: #{tpu_custom_call.1} parent=5 // pred_region
        %s344 = ssub.s32 %s14, 2
        // Predicated region
        $region45: #{tpu_custom_call.1} parent=43 // pred_check
          %p345 = pneg %p95
        $region46: #{tpu_custom_call.1} parent=43 // pred_check_branch
          %347 = sbr.rel (%p345) target = $region48
        $region47: #{tpu_custom_call.1} parent=43 // pred_region
          %s348 = smul.u32 2, %s20
          %p349 = scmp.lt.s32.totalorder %s348, 3
          %s350 = scalar_select %p349, %s348, 3
          %s351 = scalar_lea.vmem %s2, %s350
        $region48: #{tpu_custom_call.1} parent=43 // pred_fallthru
          _
      $region44: #{tpu_custom_call.1} parent=5 // pred_fallthru
        _
    $region6: #{tpu_custom_call.1} parent=1 // loop_footer
      %s18 = sadd.s32 1, %s14
    $region7: #{tpu_custom_call.1} parent=1 // loop_footer_branch
      %13 = sbr.rel target = $region3
    $region8: #{tpu_custom_call.1} parent=1 // loop_exit
      _
    %352 = vsyncpa [#allocation3], 1
    %s353 = scalar_lea.sflag [#allocation3], 1
    %354 = vsyncpa %s353, 1
    %355 = vsyncpa [#allocation5], 1
    %s356 = scalar_lea.sflag [#allocation5], 1
    %357 = vsyncpa %s356, 1

</llo_original>
